<compile_context>
chip_gen: v6e
topology: v6e:2x2x1
jax: 0.10.0
libtpu: 0.0.40
codegen_flags: <defaults>
</compile_context>

<pallas_src>
import functools

import jax
import jax.numpy as jnp
from jax.experimental import pallas as pl
from jax.experimental.pallas import tpu as pltpu


def _pick_tile(dim, candidates):
    """Largest candidate tile that divides `dim`, else the full dim."""
    for c in candidates:
        if dim % c == 0:
            return c
    return dim


# ---------------------- fused QKV projection (3 outputs) ----------------------
def _qkv_proj_kernel(x_ref, wq_ref, wk_ref, wv_ref, q_ref, k_ref, v_ref,
                     acc_q, acc_k, acc_v):
    @pl.when(pl.program_id(2) == 0)
    def _init():
        acc_q[...] = jnp.zeros_like(acc_q)
        acc_k[...] = jnp.zeros_like(acc_k)
        acc_v[...] = jnp.zeros_like(acc_v)

    x = x_ref[...]
    acc_q[...] += jnp.dot(x, wq_ref[...], preferred_element_type=jnp.float32)
    acc_k[...] += jnp.dot(x, wk_ref[...], preferred_element_type=jnp.float32)
    acc_v[...] += jnp.dot(x, wv_ref[...], preferred_element_type=jnp.float32)

    @pl.when(pl.program_id(2) == pl.num_programs(2) - 1)
    def _fin():
        q_ref[...] = acc_q[...].astype(q_ref.dtype)
        k_ref[...] = acc_k[...].astype(k_ref.dtype)
        v_ref[...] = acc_v[...].astype(v_ref.dtype)


def qkv_projection(x2d, w_q, w_k, w_v):
    """x2d: (M, K); w_*: (K, N) -> (q, k, v) each (M, N).  Reads x once."""
    M, K = x2d.shape
    _, N = w_q.shape
    tm = _pick_tile(M, (256, 128))
    tn = _pick_tile(N, (256, 128))
    tk = _pick_tile(K, (512, 256, 128))

    x_spec = pl.BlockSpec((tm, tk), lambda i, j, k: (i, k))
    w_spec = pl.BlockSpec((tk, tn), lambda i, j, k: (k, j))
    o_spec = pl.BlockSpec((tm, tn), lambda i, j, k: (i, j))
    out_sds = jax.ShapeDtypeStruct((M, N), x2d.dtype)

    return pl.pallas_call(
        _qkv_proj_kernel,
        out_shape=(out_sds, out_sds, out_sds),
        grid=(M // tm, N // tn, K // tk),
        in_specs=[x_spec, w_spec, w_spec, w_spec],
        out_specs=(o_spec, o_spec, o_spec),
        scratch_shapes=[pltpu.VMEM((tm, tn), jnp.float32)] * 3,
        compiler_params=pltpu.CompilerParams(
            dimension_semantics=("parallel", "parallel", "arbitrary")),
    )(x2d, w_q, w_k, w_v)


# ------------------------- tiled linear (with bias) ---------------------------
def _linear_bias_kernel(x_ref, w_ref, b_ref, o_ref, acc_ref):
    @pl.when(pl.program_id(2) == 0)
    def _init():
        acc_ref[...] = jnp.zeros_like(acc_ref)

    acc_ref[...] += jnp.dot(x_ref[...], w_ref[...],
                            preferred_element_type=jnp.float32)

    @pl.when(pl.program_id(2) == pl.num_programs(2) - 1)
    def _fin():
        o_ref[...] = (acc_ref[...] + b_ref[...]).astype(o_ref.dtype)


def linear(x2d, w, b):
    """x2d: (M, K), w: (K, N), b: (N,) -> (M, N), tiled + pipelined."""
    M, K = x2d.shape
    _, N = w.shape
    tm = _pick_tile(M, (256, 128))
    tn = _pick_tile(N, (256, 128))
    tk = _pick_tile(K, (512, 256, 128))
    b2d = b.reshape(1, N)

    return pl.pallas_call(
        _linear_bias_kernel,
        out_shape=jax.ShapeDtypeStruct((M, N), x2d.dtype),
        grid=(M // tm, N // tn, K // tk),
        in_specs=[pl.BlockSpec((tm, tk), lambda i, j, k: (i, k)),
                  pl.BlockSpec((tk, tn), lambda i, j, k: (k, j)),
                  pl.BlockSpec((1, tn), lambda i, j, k: (0, j))],
        out_specs=pl.BlockSpec((tm, tn), lambda i, j, k: (i, j)),
        scratch_shapes=[pltpu.VMEM((tm, tn), jnp.float32)],
        compiler_params=pltpu.CompilerParams(
            dimension_semantics=("parallel", "parallel", "arbitrary")),
    )(x2d, w, b2d)


# ----------------------- flash attention (online softmax) ---------------------
def _flash_attn_kernel(q_ref, k_ref, v_ref, o_ref, m_ref, l_ref, acc_ref,
                       *, heads, dim_head, scale):
    ki = pl.program_id(2)

    @pl.when(ki == 0)
    def _init():
        m_ref[...] = jnp.full_like(m_ref, -jnp.inf)
        l_ref[...] = jnp.zeros_like(l_ref)
        acc_ref[...] = jnp.zeros_like(acc_ref)

    d = dim_head
    # Static unroll over heads: each head is a (tq, d) x (tk, d) score tile.
    for h in range(heads):
        sl = slice(h * d, (h + 1) * d)
        qh = q_ref[0, :, sl] * scale          # (tq, d) -- scale folded into Q
        kh = k_ref[0, :, sl]                  # (tk, d)
        vh = v_ref[0, :, sl]                  # (tk, d)

        # Q @ K^T via dot_general contracting last dims (no transpose of K).
        s = jax.lax.dot_general(qh, kh, (((1,), (1,)), ((), ())),
                                preferred_element_type=jnp.float32)  # (tq, tk)

        m_prev = m_ref[h]                                            # (tq, 1)
        m_new = jnp.maximum(m_prev, s.max(axis=-1, keepdims=True))
        alpha = jnp.exp(m_prev - m_new)
        p = jnp.exp(s - m_new)                                       # (tq, tk)
        l_ref[h] = alpha * l_ref[h] + p.sum(axis=-1, keepdims=True)
        acc_ref[h] = alpha * acc_ref[h] + jnp.dot(
            p.astype(vh.dtype), vh, preferred_element_type=jnp.float32)
        m_ref[h] = m_new

    @pl.when(ki == pl.num_programs(2) - 1)
    def _fin():
        for h in range(heads):
            inv_l = pl.reciprocal(l_ref[h], approx=True)             # (tq, 1)
            o_ref[0, :, h * d:(h + 1) * d] = (
                acc_ref[h] * inv_l).astype(o_ref.dtype)


def flash_attention(q, k, v, *, heads, dim_head, scale):
    """q, k, v: (B, N, H*D) -> (B, N, H*D) (already in 'b n (h d)' layout)."""
    B, N, inner = q.shape
    tq = _pick_tile(N, (256, 128))
    tk = _pick_tile(N, (256, 128))

    q_spec = pl.BlockSpec((1, tq, inner), lambda b, qi, ki: (b, qi, 0))
    kv_spec = pl.BlockSpec((1, tk, inner), lambda b, qi, ki: (b, ki, 0))

    return pl.pallas_call(
        functools.partial(_flash_attn_kernel, heads=heads,
                          dim_head=dim_head, scale=scale),
        out_shape=jax.ShapeDtypeStruct((B, N, inner), q.dtype),
        grid=(B, N // tq, N // tk),
        in_specs=[q_spec, kv_spec, kv_spec],
        out_specs=q_spec,
        scratch_shapes=[pltpu.VMEM((heads, tq, 1), jnp.float32),     # m
                        pltpu.VMEM((heads, tq, 1), jnp.float32),     # l
                        pltpu.VMEM((heads, tq, dim_head), jnp.float32)],  # acc
        compiler_params=pltpu.CompilerParams(
            dimension_semantics=("parallel", "parallel", "arbitrary")),
    )(q, k, v)


# ------------------------------ module wrapper --------------------------------
class AttentionPallas:
    def __init__(self, dim, heads=8, dim_head=64, dropout=0.0, key=None):
        inner_dim = dim_head * heads
        self.dim = dim
        self.heads = heads
        self.dim_head = dim_head
        self.inner_dim = inner_dim
        self.scale = dim_head ** (-0.5)
        self.project_out = not (heads == 1 and dim_head == dim)

        if key is None:
            key = jax.random.PRNGKey(0)
        k1, k2, k3 = jax.random.split(key, 3)
        # Deterministic synthetic init; weights stored as (in, out).
        self.w_qkv = jax.random.normal(k1, (dim, inner_dim * 3), jnp.float32) * 0.02
        self.w_q = self.w_qkv[:, :inner_dim]
        self.w_k = self.w_qkv[:, inner_dim:2 * inner_dim]
        self.w_v = self.w_qkv[:, 2 * inner_dim:]
        if self.project_out:
            self.w_out = jax.random.normal(k2, (inner_dim, dim), jnp.float32) * 0.02
            self.b_out = jax.random.normal(k3, (dim,), jnp.float32) * 0.02
        else:
            self.w_out = None
            self.b_out = None
        # Dropout with p=0.0 is an identity; nothing to do.

    def __call__(self, x):
        B, N, _ = x.shape
        x2d = x.reshape(B * N, self.dim)

        # Fused QKV projection: one pallas_call, three lane-dense outputs.
        q, k, v = qkv_projection(x2d, self.w_q, self.w_k, self.w_v)
        q = q.reshape(B, N, self.inner_dim)
        k = k.reshape(B, N, self.inner_dim)
        v = v.reshape(B, N, self.inner_dim)

        # Flash attention; output already in 'b n (h d)' layout (no transposes).
        out = flash_attention(q, k, v, heads=self.heads,
                              dim_head=self.dim_head, scale=self.scale)
        out2d = out.reshape(B * N, self.inner_dim)

        if self.project_out:
            out2d = linear(out2d, self.w_out, self.b_out)
        return out2d.reshape(B, N, -1)


# ---------------------------------- main --------------------------------------
if __name__ == "__main__":
    key = jax.random.PRNGKey(0)
    k_x, k_w = jax.random.split(key)

    B, N, DIM = 2, 8, 32
    HEADS, DIM_HEAD = 4, 16

    x = jax.random.normal(k_x, (B, N, DIM), dtype=jnp.float32)

    module = AttentionPallas(dim=DIM, heads=HEADS, dim_head=DIM_HEAD, key=k_w)
    y = jax.block_until_ready(module(x))

    # Reference check in plain JAX (same math as the PyTorch module).
    qkv = x.reshape(B * N, DIM) @ module.w_qkv
    qkv = qkv.reshape(B, N, 3, HEADS, DIM_HEAD)
    q_r = jnp.transpose(qkv[:, :, 0], (0, 2, 1, 3))
    k_r = jnp.transpose(qkv[:, :, 1], (0, 2, 1, 3))
    v_r = jnp.transpose(qkv[:, :, 2], (0, 2, 1, 3))
    dots = jnp.einsum("bhid,bhjd->bhij", q_r, k_r) * module.scale
    attn = jax.nn.softmax(dots, axis=-1)
    ref = jnp.einsum("bhij,bhjd->bhid", attn, v_r)
    ref = jnp.transpose(ref, (0, 2, 1, 3)).reshape(B * N, HEADS * DIM_HEAD)
    ref = (ref @ module.w_out + module.b_out).reshape(B, N, DIM)

    assert y.shape == (B, N, DIM), y.shape
    err = float(jnp.abs(y - ref).max())
    # approx reciprocal in the softmax denominator -> slightly looser tolerance
    assert jnp.allclose(y, ref, atol=2e-3, rtol=2e-3), err

    print("KERNEL_OK")
</pallas_src>

<mosaic_0001>
module attributes {stable_mosaic.version = 11 : i64} {
  func.func @_qkv_proj_kernel(%arg0: i32, %arg1: i32, %arg2: i32, %arg3: memref<16x32xf32, #tpu.memory_space<vmem>>, %arg4: memref<32x64xf32, #tpu.memory_space<vmem>>, %arg5: memref<32x64xf32, #tpu.memory_space<vmem>>, %arg6: memref<32x64xf32, #tpu.memory_space<vmem>>, %arg7: memref<16x64xf32, #tpu.memory_space<vmem>>, %arg8: memref<16x64xf32, #tpu.memory_space<vmem>>, %arg9: memref<16x64xf32, #tpu.memory_space<vmem>>, %arg10: memref<16x64xf32, #tpu.memory_space<vmem>>, %arg11: memref<16x64xf32, #tpu.memory_space<vmem>>, %arg12: memref<16x64xf32, #tpu.memory_space<vmem>>) attributes {dimension_semantics = [#tpu.dimension_semantics<parallel>, #tpu.dimension_semantics<parallel>, #tpu.dimension_semantics<arbitrary>], iteration_bounds = array<i64: 1, 1, 1>, scalar_prefetch = 0 : i64, scratch_operands = 3 : i64, tpu.core_type = #tpu.core_type<tc>, window_params = [{transform_indices = @transform_0, window_bounds = array<i64: 16, 32>}, {transform_indices = @transform_1, window_bounds = array<i64: 32, 64>}, {transform_indices = @transform_2, window_bounds = array<i64: 32, 64>}, {transform_indices = @transform_3, window_bounds = array<i64: 32, 64>}, {transform_indices = @transform_4, window_bounds = array<i64: 16, 64>}, {transform_indices = @transform_5, window_bounds = array<i64: 16, 64>}, {transform_indices = @transform_6, window_bounds = array<i64: 16, 64>}]} {
    %c0_i32 = arith.constant 0 : i32
    %0 = arith.cmpi eq, %arg2, %c0_i32 : i32
    %1 = arith.extui %0 : i1 to i32
    %c0_i32_0 = arith.constant 0 : i32
    %2 = arith.cmpi ne, %1, %c0_i32_0 : i32
    scf.if %2 {
      %cst_24 = arith.constant 0.000000e+00 : f32
      %22 = vector.broadcast %cst_24 : f32 to vector<16x64xf32>
      %c0_25 = arith.constant 0 : index
      %c0_26 = arith.constant 0 : index
      %23 = vector.load %arg10[%c0_25, %c0_26] : memref<16x64xf32, #tpu.memory_space<vmem>>, vector<16x64xf32>
      tpu.vector_store %arg10[%c0_25, %c0_26], %22 {strides = array<i32>} : memref<16x64xf32, #tpu.memory_space<vmem>>, vector<16x64xf32>,
      %cst_27 = arith.constant 0.000000e+00 : f32
      %24 = vector.broadcast %cst_27 : f32 to vector<16x64xf32>
      %c0_28 = arith.constant 0 : index
      %c0_29 = arith.constant 0 : index
      %25 = vector.load %arg11[%c0_28, %c0_29] : memref<16x64xf32, #tpu.memory_space<vmem>>, vector<16x64xf32>
      tpu.vector_store %arg11[%c0_28, %c0_29], %24 {strides = array<i32>} : memref<16x64xf32, #tpu.memory_space<vmem>>, vector<16x64xf32>,
      %cst_30 = arith.constant 0.000000e+00 : f32
      %26 = vector.broadcast %cst_30 : f32 to vector<16x64xf32>
      %c0_31 = arith.constant 0 : index
      %c0_32 = arith.constant 0 : index
      %27 = vector.load %arg12[%c0_31, %c0_32] : memref<16x64xf32, #tpu.memory_space<vmem>>, vector<16x64xf32>
      tpu.vector_store %arg12[%c0_31, %c0_32], %26 {strides = array<i32>} : memref<16x64xf32, #tpu.memory_space<vmem>>, vector<16x64xf32>,
    } else {
    }
    %c0 = arith.constant 0 : index
    %c0_1 = arith.constant 0 : index
    %3 = vector.load %arg3[%c0, %c0_1] : memref<16x32xf32, #tpu.memory_space<vmem>>, vector<16x32xf32>
    %c0_2 = arith.constant 0 : index
    %c0_3 = arith.constant 0 : index
    %4 = vector.load %arg10[%c0_2, %c0_3] : memref<16x64xf32, #tpu.memory_space<vmem>>, vector<16x64xf32>
    %c0_4 = arith.constant 0 : index
    %c0_5 = arith.constant 0 : index
    %5 = vector.load %arg4[%c0_4, %c0_5] : memref<32x64xf32, #tpu.memory_space<vmem>>, vector<32x64xf32>
    %cst = arith.constant dense<0.000000e+00> : vector<16x64xf32>
    %6 = tpu.matmul %3, %5, %cst {dimension_numbers = #tpu.dot_dimension_numbers<[1], [0], [0], [1], [0, 0, 1, 1], [], []>} : vector<16x32xf32>, vector<32x64xf32>, vector<16x64xf32> -> vector<16x64xf32>
    %7 = arith.addf %4, %6 : vector<16x64xf32>
    %c0_6 = arith.constant 0 : index
    %c0_7 = arith.constant 0 : index
    %8 = vector.load %arg10[%c0_6, %c0_7] : memref<16x64xf32, #tpu.memory_space<vmem>>, vector<16x64xf32>
    tpu.vector_store %arg10[%c0_6, %c0_7], %7 {strides = array<i32>} : memref<16x64xf32, #tpu.memory_space<vmem>>, vector<16x64xf32>,
    %c0_8 = arith.constant 0 : index
    %c0_9 = arith.constant 0 : index
    %9 = vector.load %arg11[%c0_8, %c0_9] : memref<16x64xf32, #tpu.memory_space<vmem>>, vector<16x64xf32>
    %c0_10 = arith.constant 0 : index
    %c0_11 = arith.constant 0 : index
    %10 = vector.load %arg5[%c0_10, %c0_11] : memref<32x64xf32, #tpu.memory_space<vmem>>, vector<32x64xf32>
    %cst_12 = arith.constant dense<0.000000e+00> : vector<16x64xf32>
    %11 = tpu.matmul %3, %10, %cst_12 {dimension_numbers = #tpu.dot_dimension_numbers<[1], [0], [0], [1], [0, 0, 1, 1], [], []>} : vector<16x32xf32>, vector<32x64xf32>, vector<16x64xf32> -> vector<16x64xf32>
    %12 = arith.addf %9, %11 : vector<16x64xf32>
    %c0_13 = arith.constant 0 : index
    %c0_14 = arith.constant 0 : index
    %13 = vector.load %arg11[%c0_13, %c0_14] : memref<16x64xf32, #tpu.memory_space<vmem>>, vector<16x64xf32>
    tpu.vector_store %arg11[%c0_13, %c0_14], %12 {strides = array<i32>} : memref<16x64xf32, #tpu.memory_space<vmem>>, vector<16x64xf32>,
    %c0_15 = arith.constant 0 : index
    %c0_16 = arith.constant 0 : index
    %14 = vector.load %arg12[%c0_15, %c0_16] : memref<16x64xf32, #tpu.memory_space<vmem>>, vector<16x64xf32>
    %c0_17 = arith.constant 0 : index
    %c0_18 = arith.constant 0 : index
    %15 = vector.load %arg6[%c0_17, %c0_18] : memref<32x64xf32, #tpu.memory_space<vmem>>, vector<32x64xf32>
    %cst_19 = arith.constant dense<0.000000e+00> : vector<16x64xf32>
    %16 = tpu.matmul %3, %15, %cst_19 {dimension_numbers = #tpu.dot_dimension_numbers<[1], [0], [0], [1], [0, 0, 1, 1], [], []>} : vector<16x32xf32>, vector<32x64xf32>, vector<16x64xf32> -> vector<16x64xf32>
    %17 = arith.addf %14, %16 : vector<16x64xf32>
    %c0_20 = arith.constant 0 : index
    %c0_21 = arith.constant 0 : index
    %18 = vector.load %arg12[%c0_20, %c0_21] : memref<16x64xf32, #tpu.memory_space<vmem>>, vector<16x64xf32>
    tpu.vector_store %arg12[%c0_20, %c0_21], %17 {strides = array<i32>} : memref<16x64xf32, #tpu.memory_space<vmem>>, vector<16x64xf32>,
    %c0_i32_22 = arith.constant 0 : i32
    %19 = arith.cmpi eq, %arg2, %c0_i32_22 : i32
    %20 = arith.extui %19 : i1 to i32
    %c0_i32_23 = arith.constant 0 : i32
    %21 = arith.cmpi ne, %20, %c0_i32_23 : i32
    scf.if %21 {
      %c0_24 = arith.constant 0 : index
      %c0_25 = arith.constant 0 : index
      %22 = vector.load %arg10[%c0_24, %c0_25] : memref<16x64xf32, #tpu.memory_space<vmem>>, vector<16x64xf32>
      %c0_26 = arith.constant 0 : index
      %c0_27 = arith.constant 0 : index
      %23 = vector.load %arg7[%c0_26, %c0_27] : memref<16x64xf32, #tpu.memory_space<vmem>>, vector<16x64xf32>
      tpu.vector_store %arg7[%c0_26, %c0_27], %22 {strides = array<i32>} : memref<16x64xf32, #tpu.memory_space<vmem>>, vector<16x64xf32>,
      %c0_28 = arith.constant 0 : index
      %c0_29 = arith.constant 0 : index
      %24 = vector.load %arg11[%c0_28, %c0_29] : memref<16x64xf32, #tpu.memory_space<vmem>>, vector<16x64xf32>
      %c0_30 = arith.constant 0 : index
      %c0_31 = arith.constant 0 : index
      %25 = vector.load %arg8[%c0_30, %c0_31] : memref<16x64xf32, #tpu.memory_space<vmem>>, vector<16x64xf32>
      tpu.vector_store %arg8[%c0_30, %c0_31], %24 {strides = array<i32>} : memref<16x64xf32, #tpu.memory_space<vmem>>, vector<16x64xf32>,
      %c0_32 = arith.constant 0 : index
      %c0_33 = arith.constant 0 : index
      %26 = vector.load %arg12[%c0_32, %c0_33] : memref<16x64xf32, #tpu.memory_space<vmem>>, vector<16x64xf32>
      %c0_34 = arith.constant 0 : index
      %c0_35 = arith.constant 0 : index
      %27 = vector.load %arg9[%c0_34, %c0_35] : memref<16x64xf32, #tpu.memory_space<vmem>>, vector<16x64xf32>
      tpu.vector_store %arg9[%c0_34, %c0_35], %26 {strides = array<i32>} : memref<16x64xf32, #tpu.memory_space<vmem>>, vector<16x64xf32>,
    } else {
    }
    return
  }
  func.func @transform_0(%arg0: i32, %arg1: i32, %arg2: i32) -> (i32, i32) {
    %c0_i32 = arith.constant 0 : i32
    return %arg0, %arg2 : i32, i32
  }
  func.func @transform_1(%arg0: i32, %arg1: i32, %arg2: i32) -> (i32, i32) {
    %c0_i32 = arith.constant 0 : i32
    return %arg2, %arg1 : i32, i32
  }
  func.func @transform_2(%arg0: i32, %arg1: i32, %arg2: i32) -> (i32, i32) {
    %c0_i32 = arith.constant 0 : i32
    return %arg2, %arg1 : i32, i32
  }
  func.func @transform_3(%arg0: i32, %arg1: i32, %arg2: i32) -> (i32, i32) {
    %c0_i32 = arith.constant 0 : i32
    return %arg2, %arg1 : i32, i32
  }
  func.func @transform_4(%arg0: i32, %arg1: i32, %arg2: i32) -> (i32, i32) {
    %c0_i32 = arith.constant 0 : i32
    return %arg0, %arg1 : i32, i32
  }
  func.func @transform_5(%arg0: i32, %arg1: i32, %arg2: i32) -> (i32, i32) {
    %c0_i32 = arith.constant 0 : i32
    return %arg0, %arg1 : i32, i32
  }
  func.func @transform_6(%arg0: i32, %arg1: i32, %arg2: i32) -> (i32, i32) {
    %c0_i32 = arith.constant 0 : i32
    return %arg0, %arg1 : i32, i32
  }
}

</mosaic_0001>

<llo_original>
// kernel: tpu_custom_call.1
$region0: #{tpu_custom_call.1}
  #allocation0 [shape = 'u32[]', space=smem, size = 0x4, offset = 0x4, fixed_abs, tag = 'smem constant byte address 0x4 - core index']
  #allocation1 [shape = 'u32[144,128]{1,0:T(1,128)}', space=vmem, size = 0x12000, scoped, tag = 'internal scratch']
  #allocation2 [shape = 'f32[16,64]{1,0:T(8,128)}', space=vmem, size = 0x2000, scoped, tag = 'scratch operand']
  #allocation3 [shape = 'f32[16,64]{1,0:T(8,128)}', space=vmem, size = 0x2000, scoped, tag = 'scratch operand']
  #allocation4 [shape = 'f32[16,64]{1,0:T(8,128)}', space=vmem, size = 0x2000, scoped, tag = 'scratch operand']
  %s0 = inlined_call_operand.hbm [shape: f32[16,32], index: 0, kind: input, shape index: {}]
  %s1 = inlined_call_operand.hbm [shape: f32[32,64], index: 1, kind: input, shape index: {}]
  %s2 = inlined_call_operand.hbm [shape: f32[32,64], index: 2, kind: input, shape index: {}]
  %s3 = inlined_call_operand.hbm [shape: f32[32,64], index: 3, kind: input, shape index: {}]
  %s4 = inlined_call_operand.hbm [shape: f32[16,64], index: 4, kind: output, shape index: {0}]
  %s5 = inlined_call_operand.hbm [shape: f32[16,64], index: 5, kind: output, shape index: {1}]
  %s6 = inlined_call_operand.hbm [shape: f32[16,64], index: 6, kind: output, shape index: {2}]
  %7 = xla_tuple %s4, %s5, %s6
  %s8 = sld [smem:[#allocation0]]
  $region66: #{tpu_custom_call.1} parent=0
    _
  %s10 = ssub.s32 1, %s8
  %s11 = scalar_select 0, %s10, %s8
  $region1: #{tpu_custom_call.1} parent=0
    #allocation5 [shape = 'u8[8192]{0}', space=vmem, size = 0x2000, scoped, tag = 'input window, operand 0, single buffered']
    #allocation6 [shape = 's32[1]{0}', space=sflag, size = 0x4, scoped, tag = 'scoped memory for tpu_custom_call.1']
    #allocation7 [shape = 's32[1]{0}', space=sflag, size = 0x4, scoped, tag = 'scoped memory for tpu_custom_call.1']
    #allocation8 [shape = 'u8[16384]{0}', space=vmem, size = 0x4000, scoped, tag = 'input window, operand 1, single buffered']
    #allocation9 [shape = 's32[1]{0}', space=sflag, size = 0x4, scoped, tag = 'scoped memory for tpu_custom_call.1']
    #allocation10 [shape = 'u8[16384]{0}', space=vmem, size = 0x4000, scoped, tag = 'input window, operand 2, single buffered']
    #allocation11 [shape = 'u8[16384]{0}', space=vmem, size = 0x4000, scoped, tag = 'input window, operand 3, single buffered']
    #allocation12 [shape = 's32[1]{0}', space=sflag, size = 0x4, scoped, tag = 'scoped memory for tpu_custom_call.1']
    #allocation13 [shape = 'u8[8192]{0}', space=vmem, size = 0x2000, scoped, tag = 'output window, operand 0, single buffered']
    #allocation14 [shape = 'u8[8192]{0}', space=vmem, size = 0x2000, scoped, tag = 'output window, operand 1, single buffered']
    #allocation15 [shape = 's32[1]{0}', space=sflag, size = 0x4, scoped, tag = 'scoped memory for tpu_custom_call.1']
    #allocation16 [shape = 'u8[8192]{0}', space=vmem, size = 0x2000, scoped, tag = 'output window, operand 2, single buffered']
    %12 = vsyncpa [#allocation6], 0
    %13 = vsyncpa [#allocation9], 0
    %14 = vsyncpa [#allocation12], 0
    %15 = vsyncpa [#allocation7], 0
    %16 = vsyncpa [#allocation15], 0
    // Predicated region
    $region2: #{tpu_custom_call.1} parent=1 // pred_check
      _
    $region3: #{tpu_custom_call.1} parent=1 // pred_check_branch
      %18 = sbr.rel (0) target = $region5
    $region4: #{tpu_custom_call.1} parent=1 // pred_region
      %s20 = ssub.s32 256, 256
      %21 = vsyncadd [#allocation6], %s20
      %s22 = sshll.u32 [#allocation5], 4
      %s23 = int_to_ptr.vmem [resolvable:$true] %s22
      %28 = dma.hbm_to_vmem [thread:$0]  %s0, 256, %s23, [#allocation6], 128, 128, 8
    $region5: #{tpu_custom_call.1} parent=1 // pred_fallthru
      _
    // Predicated region
    $region6: #{tpu_custom_call.1} parent=1 // pred_check
      _
    $region7: #{tpu_custom_call.1} parent=1 // pred_check_branch
      %30 = sbr.rel (0) target = $region9
    $region8: #{tpu_custom_call.1} parent=1 // pred_region
      %s32 = ssub.s32 512, 512
      %33 = vsyncadd [#allocation9], %s32
      %s34 = sshll.u32 [#allocation8], 4
      %s35 = int_to_ptr.vmem [resolvable:$true] %s34
      %40 = dma.hbm_to_vmem [thread:$0]  %s1, 512, %s35, [#allocation9], 128, 128, 8
    $region9: #{tpu_custom_call.1} parent=1 // pred_fallthru
      _
    // Predicated region
    $region10: #{tpu_custom_call.1} parent=1 // pred_check
      _
    $region11: #{tpu_custom_call.1} parent=1 // pred_check_branch
      %42 = sbr.rel (0) target = $region13
    $region12: #{tpu_custom_call.1} parent=1 // pred_region
      %s44 = ssub.s32 512, 512
      %45 = vsyncadd [#allocation9], %s44
      %s46 = sshll.u32 [#allocation10], 4
      %s47 = int_to_ptr.vmem [resolvable:$true] %s46
      %52 = dma.hbm_to_vmem [thread:$0]  %s2, 512, %s47, [#allocation9], 128, 128, 8
    $region13: #{tpu_custom_call.1} parent=1 // pred_fallthru
      _
    // Predicated region
    $region14: #{tpu_custom_call.1} parent=1 // pred_check
      _
    $region15: #{tpu_custom_call.1} parent=1 // pred_check_branch
      %54 = sbr.rel (0) target = $region17
    $region16: #{tpu_custom_call.1} parent=1 // pred_region
      %s56 = ssub.s32 512, 512
      %57 = vsyncadd [#allocation12], %s56
      %s58 = sshll.u32 [#allocation11], 4
      %s59 = int_to_ptr.vmem [resolvable:$true] %s58
      %64 = dma.hbm_to_vmem [thread:$0]  %s3, 512, %s59, [#allocation12], 128, 128, 8
    $region17: #{tpu_custom_call.1} parent=1 // pred_fallthru
      _
    // Predicated region
    $region18: #{tpu_custom_call.1} parent=1 // pred_check
      _
    $region19: #{tpu_custom_call.1} parent=1 // pred_check_branch
      %66 = sbr.rel (0) target = $region21
    $region20: #{tpu_custom_call.1} parent=1 // pred_region
      %67 = dma.done [#allocation6], 256
    $region21: #{tpu_custom_call.1} parent=1 // pred_fallthru
      _
    // Predicated region
    $region22: #{tpu_custom_call.1} parent=1 // pred_check
      _
    $region23: #{tpu_custom_call.1} parent=1 // pred_check_branch
      %69 = sbr.rel (0) target = $region25
    $region24: #{tpu_custom_call.1} parent=1 // pred_region
      %70 = dma.done [#allocation9], 512
    $region25: #{tpu_custom_call.1} parent=1 // pred_fallthru
      _
    // Predicated region
    $region26: #{tpu_custom_call.1} parent=1 // pred_check
      _
    $region27: #{tpu_custom_call.1} parent=1 // pred_check_branch
      %72 = sbr.rel (0) target = $region29
    $region28: #{tpu_custom_call.1} parent=1 // pred_region
      %73 = dma.done [#allocation9], 512
    $region29: #{tpu_custom_call.1} parent=1 // pred_fallthru
      _
    // Predicated region
    $region30: #{tpu_custom_call.1} parent=1 // pred_check
      _
    $region31: #{tpu_custom_call.1} parent=1 // pred_check_branch
      %75 = sbr.rel (0) target = $region33
    $region32: #{tpu_custom_call.1} parent=1 // pred_region
      %76 = dma.done [#allocation12], 512
    $region33: #{tpu_custom_call.1} parent=1 // pred_fallthru
      _
    %p77 = scmp.eq.s32.totalorder 0, 0
    // Predicated region
    $region34: #{tpu_custom_call.1} parent=1 // pred_check
      %p78 = pneg %p77
    $region35: #{tpu_custom_call.1} parent=1 // pred_check_branch
      %80 = sbr.rel (%p78) target = $region37
    $region36: #{tpu_custom_call.1} parent=1 // pred_region
      %vm81 = vcmask 523264
      %82 = vst.msk [vmem:[#allocation2] sm:$0xff] %vm81, 0.0
      %83 = vst.msk [vmem:[#allocation2 + $0x8] sm:$0xff] %vm81, 0.0
      %84 = vst.msk [vmem:[#allocation3] sm:$0xff] %vm81, 0.0
      %85 = vst.msk [vmem:[#allocation3 + $0x8] sm:$0xff] %vm81, 0.0
      %86 = vst.msk [vmem:[#allocation4] sm:$0xff] %vm81, 0.0
      %87 = vst.msk [vmem:[#allocation4 + $0x8] sm:$0xff] %vm81, 0.0
    $region37: #{tpu_custom_call.1} parent=1 // pred_fallthru
      _
    %v88 = vld [vmem:[#allocation5] sm:$0xff]
    %v89 = vld [vmem:[#allocation5 + $0x8] sm:$0xff]
    %v90 = vld [vmem:[#allocation2] sm:$0xff]
    %v91 = vld [vmem:[#allocation2 + $0x8] sm:$0xff]
    %v92 = vld [vmem:[#allocation8] sm:$0xff]
    %v93 = vld [vmem:[#allocation8 + $0x8] sm:$0xff]
    %v94 = vld [vmem:[#allocation8 + $0x10] sm:$0xff]
    %v95 = vld [vmem:[#allocation8 + $0x18] sm:$0xff]
    %vm96 = vcmask 261120
    %v98 = vsel %vm96, %v88, 0
    %v101 = vsel %vm96, %v89, 0
    %103 = vmatprep.subr.mxu0 0.0
    %104 = vmatpush1.msra.mxu0 0.0
    %105 = vmatprep.subr.mxu0 0.0
    %106 = vmatpush1.msra.mxu0 0.0
    %107 = vmatprep.subr.mxu0 0.0
    %108 = vmatpush1.msra.mxu0 0.0
    %109 = vmatprep.subr.mxu0 0.0
    %110 = vmatpush1.msra.mxu0 0.0
    %111 = vmatprep.subr.mxu0 0.0
    %112 = vmatpush1.msra.mxu0 0.0
    %113 = vmatprep.subr.mxu0 0.0
    %114 = vmatpush1.msra.mxu0 0.0
    %115 = vmatprep.subr.mxu0 0.0
    %116 = vmatpush1.msra.mxu0 0.0
    %117 = vmatprep.subr.mxu0 0.0
    %118 = vmatpush1.msra.mxu0 0.0
    %119 = vmatprep.subr.mxu0 0.0
    %120 = vmatpush1.msra.mxu0 0.0
    %121 = vmatprep.subr.mxu0 0.0
    %122 = vmatpush1.msra.mxu0 0.0
    %123 = vmatprep.subr.mxu0 0.0
    %124 = vmatpush1.msra.mxu0 0.0
    %125 = vmatprep.subr.mxu0 0.0
    %126 = vmatpush1.msra.mxu0 0.0
    %127 = vmatprep.subr.mxu0 0.0
    %128 = vmatpush1.msra.mxu0 %v95
    %129 = vmatprep.subr.mxu0 0.0
    %130 = vmatpush1.msra.mxu0 %v94
    %131 = vmatprep.subr.mxu0 0.0
    %132 = vmatpush1.msra.mxu0 %v93
    %133 = vmatprep.subr.mxu0 0.0
    %134 = vmatpush1.msra.mxu0 %v92
    %135 = vmatprep.subr.mxu0 0.0
    %136 = vmatpush2.msra.mxu0 0.0
    %137 = vmatprep.subr.mxu0 0.0
    %138 = vmatpush2.msra.mxu0 0.0
    %139 = vmatprep.subr.mxu0 0.0
    %140 = vmatpush2.msra.mxu0 0.0
    %141 = vmatprep.subr.mxu0 0.0
    %142 = vmatpush2.msra.mxu0 0.0
    %143 = vmatprep.subr.mxu0 0.0
    %144 = vmatpush2.msra.mxu0 0.0
    %145 = vmatprep.subr.mxu0 0.0
    %146 = vmatpush2.msra.mxu0 0.0
    %147 = vmatprep.subr.mxu0 0.0
    %148 = vmatpush2.msra.mxu0 0.0
    %149 = vmatprep.subr.mxu0 0.0
    %150 = vmatpush2.msra.mxu0 0.0
    %151 = vmatprep.subr.mxu0 0.0
    %152 = vmatpush2.msra.mxu0 0.0
    %153 = vmatprep.subr.mxu0 0.0
    %154 = vmatpush2.msra.mxu0 0.0
    %155 = vmatprep.subr.mxu0 0.0
    %156 = vmatpush2.msra.mxu0 0.0
    %157 = vmatprep.subr.mxu0 0.0
    %158 = vmatpush2.msra.mxu0 0.0
    %159 = vmatprep.subr.mxu0 0.0
    %160 = vmatpush2.msra.mxu0 0.0
    %161 = vmatprep.subr.mxu0 0.0
    %162 = vmatpush2.msra.mxu0 0.0
    %163 = vmatprep.subr.mxu0 0.0
    %164 = vmatpush2.msra.mxu0 0.0
    %165 = vmatprep.subr.mxu0 0.0
    %166 = vmatpush2.msra.mxu0 0.0
    %167 = vmatprep.mubr.f32.mxu0 0.0
    %168 = vmatmul.mubr.f32.gmra.mxu0 %v98
    %v169 = vpop.f32.mrf.mxu0
    %v170 = vadd.f32 0.0, %v169
    %v171 = vpop.f32.mrf.mxu0
    %172 = vmatprep.mubr.f32.mxu0 0.0
    %173 = vmatmul.mubr.f32.gmra.mxu0 %v101
    %v174 = vpop.f32.mrf.mxu0
    %v175 = vadd.f32 0.0, %v174
    %v176 = vpop.f32.mrf.mxu0
    %177 = vdwg.mxu0
    %v178 = vadd.f32 %v90, %v170
    %v179 = vadd.f32 %v91, %v175
    %vm180 = vcmask 523264
    %181 = vst.msk [vmem:[#allocation2] sm:$0xff] %vm180, %v178
    %182 = vst.msk [vmem:[#allocation2 + $0x8] sm:$0xff] %vm180, %v179
    %v183 = vld [vmem:[#allocation3] sm:$0xff]
    %v184 = vld [vmem:[#allocation3 + $0x8] sm:$0xff]
    %v185 = vld [vmem:[#allocation10] sm:$0xff]
    %v186 = vld [vmem:[#allocation10 + $0x8] sm:$0xff]
    %v187 = vld [vmem:[#allocation10 + $0x10] sm:$0xff]
    %v188 = vld [vmem:[#allocation10 + $0x18] sm:$0xff]
    %189 = vmatprep.subr.mxu0 0.0
    %190 = vmatpush1.msra.mxu0 0.0
    %191 = vmatprep.subr.mxu0 0.0
    %192 = vmatpush1.msra.mxu0 0.0
    %193 = vmatprep.subr.mxu0 0.0
    %194 = vmatpush1.msra.mxu0 0.0
    %195 = vmatprep.subr.mxu0 0.0
    %196 = vmatpush1.msra.mxu0 0.0
    %197 = vmatprep.subr.mxu0 0.0
    %198 = vmatpush1.msra.mxu0 0.0
    %199 = vmatprep.subr.mxu0 0.0
    %200 = vmatpush1.msra.mxu0 0.0
    %201 = vmatprep.subr.mxu0 0.0
    %202 = vmatpush1.msra.mxu0 0.0
    %203 = vmatprep.subr.mxu0 0.0
    %204 = vmatpush1.msra.mxu0 0.0
    %205 = vmatprep.subr.mxu0 0.0
    %206 = vmatpush1.msra.mxu0 0.0
    %207 = vmatprep.subr.mxu0 0.0
    %208 = vmatpush1.msra.mxu0 0.0
    %209 = vmatprep.subr.mxu0 0.0
    %210 = vmatpush1.msra.mxu0 0.0
    %211 = vmatprep.subr.mxu0 0.0
    %212 = vmatpush1.msra.mxu0 0.0
    %213 = vmatprep.subr.mxu0 0.0
    %214 = vmatpush1.msra.mxu0 %v188
    %215 = vmatprep.subr.mxu0 0.0
    %216 = vmatpush1.msra.mxu0 %v187
    %217 = vmatprep.subr.mxu0 0.0
    %218 = vmatpush1.msra.mxu0 %v186
    %219 = vmatprep.subr.mxu0 0.0
    %220 = vmatpush1.msra.mxu0 %v185
    %221 = vmatprep.subr.mxu0 0.0
    %222 = vmatpush2.msra.mxu0 0.0
    %223 = vmatprep.subr.mxu0 0.0
    %224 = vmatpush2.msra.mxu0 0.0
    %225 = vmatprep.subr.mxu0 0.0
    %226 = vmatpush2.msra.mxu0 0.0
    %227 = vmatprep.subr.mxu0 0.0
    %228 = vmatpush2.msra.mxu0 0.0
    %229 = vmatprep.subr.mxu0 0.0
    %230 = vmatpush2.msra.mxu0 0.0
    %231 = vmatprep.subr.mxu0 0.0
    %232 = vmatpush2.msra.mxu0 0.0
    %233 = vmatprep.subr.mxu0 0.0
    %234 = vmatpush2.msra.mxu0 0.0
    %235 = vmatprep.subr.mxu0 0.0
    %236 = vmatpush2.msra.mxu0 0.0
    %237 = vmatprep.subr.mxu0 0.0
    %238 = vmatpush2.msra.mxu0 0.0
    %239 = vmatprep.subr.mxu0 0.0
    %240 = vmatpush2.msra.mxu0 0.0
    %241 = vmatprep.subr.mxu0 0.0
    %242 = vmatpush2.msra.mxu0 0.0
    %243 = vmatprep.subr.mxu0 0.0
    %244 = vmatpush2.msra.mxu0 0.0
    %245 = vmatprep.subr.mxu0 0.0
    %246 = vmatpush2.msra.mxu0 0.0
    %247 = vmatprep.subr.mxu0 0.0
    %248 = vmatpush2.msra.mxu0 0.0
    %249 = vmatprep.subr.mxu0 0.0
    %250 = vmatpush2.msra.mxu0 0.0
    %251 = vmatprep.subr.mxu0 0.0
    %252 = vmatpush2.msra.mxu0 0.0
    %253 = vmatprep.mubr.f32.mxu0 0.0
    %254 = vmatmul.mubr.f32.gmra.mxu0 %v98
    %v255 = vpop.f32.mrf.mxu0
    %v256 = vadd.f32 0.0, %v255
    %v257 = vpop.f32.mrf.mxu0
    %258 = vmatprep.mubr.f32.mxu0 0.0
    %259 = vmatmul.mubr.f32.gmra.mxu0 %v101
    %v260 = vpop.f32.mrf.mxu0
    %v261 = vadd.f32 0.0, %v260
    %v262 = vpop.f32.mrf.mxu0
    %263 = vdwg.mxu0
    %v264 = vadd.f32 %v183, %v256
    %v265 = vadd.f32 %v184, %v261
    %266 = vst.msk [vmem:[#allocation3] sm:$0xff] %vm180, %v264
    %267 = vst.msk [vmem:[#allocation3 + $0x8] sm:$0xff] %vm180, %v265
    %v268 = vld [vmem:[#allocation4] sm:$0xff]
    %v269 = vld [vmem:[#allocation4 + $0x8] sm:$0xff]
    %v270 = vld [vmem:[#allocation11] sm:$0xff]
    %v271 = vld [vmem:[#allocation11 + $0x8] sm:$0xff]
    %v272 = vld [vmem:[#allocation11 + $0x10] sm:$0xff]
    %v273 = vld [vmem:[#allocation11 + $0x18] sm:$0xff]
    %274 = vmatprep.subr.mxu0 0.0
    %275 = vmatpush1.msra.mxu0 0.0
    %276 = vmatprep.subr.mxu0 0.0
    %277 = vmatpush1.msra.mxu0 0.0
    %278 = vmatprep.subr.mxu0 0.0
    %279 = vmatpush1.msra.mxu0 0.0
    %280 = vmatprep.subr.mxu0 0.0
    %281 = vmatpush1.msra.mxu0 0.0
    %282 = vmatprep.subr.mxu0 0.0
    %283 = vmatpush1.msra.mxu0 0.0
    %284 = vmatprep.subr.mxu0 0.0
    %285 = vmatpush1.msra.mxu0 0.0
    %286 = vmatprep.subr.mxu0 0.0
    %287 = vmatpush1.msra.mxu0 0.0
    %288 = vmatprep.subr.mxu0 0.0
    %289 = vmatpush1.msra.mxu0 0.0
    %290 = vmatprep.subr.mxu0 0.0
    %291 = vmatpush1.msra.mxu0 0.0
    %292 = vmatprep.subr.mxu0 0.0
    %293 = vmatpush1.msra.mxu0 0.0
    %294 = vmatprep.subr.mxu0 0.0
    %295 = vmatpush1.msra.mxu0 0.0
    %296 = vmatprep.subr.mxu0 0.0
    %297 = vmatpush1.msra.mxu0 0.0
    %298 = vmatprep.subr.mxu0 0.0
    %299 = vmatpush1.msra.mxu0 %v273
    %300 = vmatprep.subr.mxu0 0.0
    %301 = vmatpush1.msra.mxu0 %v272
    %302 = vmatprep.subr.mxu0 0.0
    %303 = vmatpush1.msra.mxu0 %v271
    %304 = vmatprep.subr.mxu0 0.0
    %305 = vmatpush1.msra.mxu0 %v270
    %306 = vmatprep.subr.mxu0 0.0
    %307 = vmatpush2.msra.mxu0 0.0
    %308 = vmatprep.subr.mxu0 0.0
    %309 = vmatpush2.msra.mxu0 0.0
    %310 = vmatprep.subr.mxu0 0.0
    %311 = vmatpush2.msra.mxu0 0.0
    %312 = vmatprep.subr.mxu0 0.0
    %313 = vmatpush2.msra.mxu0 0.0
    %314 = vmatprep.subr.mxu0 0.0
    %315 = vmatpush2.msra.mxu0 0.0
    %316 = vmatprep.subr.mxu0 0.0
    %317 = vmatpush2.msra.mxu0 0.0
    %318 = vmatprep.subr.mxu0 0.0
    %319 = vmatpush2.msra.mxu0 0.0
    %320 = vmatprep.subr.mxu0 0.0
    %321 = vmatpush2.msra.mxu0 0.0
    %322 = vmatprep.subr.mxu0 0.0
    %323 = vmatpush2.msra.mxu0 0.0
    %324 = vmatprep.subr.mxu0 0.0
    %325 = vmatpush2.msra.mxu0 0.0
    %326 = vmatprep.subr.mxu0 0.0
    %327 = vmatpush2.msra.mxu0 0.0
    %328 = vmatprep.subr.mxu0 0.0
    %329 = vmatpush2.msra.mxu0 0.0
    %330 = vmatprep.subr.mxu0 0.0
    %331 = vmatpush2.msra.mxu0 0.0
    %332 = vmatprep.subr.mxu0 0.0
    %333 = vmatpush2.msra.mxu0 0.0
    %334 = vmatprep.subr.mxu0 0.0
    %335 = vmatpush2.msra.mxu0 0.0
    %336 = vmatprep.subr.mxu0 0.0
    %337 = vmatpush2.msra.mxu0 0.0
    %338 = vmatprep.mubr.f32.mxu0 0.0
    %339 = vmatmul.mubr.f32.gmra.mxu0 %v98
    %v340 = vpop.f32.mrf.mxu0
    %v341 = vadd.f32 0.0, %v340
    %v342 = vpop.f32.mrf.mxu0
    %343 = vmatprep.mubr.f32.mxu0 0.0
    %344 = vmatmul.mubr.f32.gmra.mxu0 %v101
    %v345 = vpop.f32.mrf.mxu0
    %v346 = vadd.f32 0.0, %v345
    %v347 = vpop.f32.mrf.mxu0
    %348 = vdwg.mxu0
    %v349 = vadd.f32 %v268, %v341
    %v350 = vadd.f32 %v269, %v346
    %351 = vst.msk [vmem:[#allocation4] sm:$0xff] %vm180, %v349
    %352 = vst.msk [vmem:[#allocation4 + $0x8] sm:$0xff] %vm180, %v350
    // Predicated region
    $region38: #{tpu_custom_call.1} parent=1 // pred_check
      %p353 = pneg %p77
    $region39: #{tpu_custom_call.1} parent=1 // pred_check_branch
      %355 = sbr.rel (%p353) target = $region41
    $region40: #{tpu_custom_call.1} parent=1 // pred_region
      %v356 = vld [vmem:[#allocation2] sm:$0xff]
      %v357 = vld [vmem:[#allocation2 + $0x8] sm:$0xff]
      %358 = vst.msk [vmem:[#allocation13] sm:$0xff] %vm180, %v356
      %359 = vst.msk [vmem:[#allocation13 + $0x8] sm:$0xff] %vm180, %v357
      %v360 = vld [vmem:[#allocation3] sm:$0xff]
      %v361 = vld [vmem:[#allocation3 + $0x8] sm:$0xff]
      %362 = vst.msk [vmem:[#allocation14] sm:$0xff] %vm180, %v360
      %363 = vst.msk [vmem:[#allocation14 + $0x8] sm:$0xff] %vm180, %v361
      %v364 = vld [vmem:[#allocation4] sm:$0xff]
      %v365 = vld [vmem:[#allocation4 + $0x8] sm:$0xff]
      %366 = vst.msk [vmem:[#allocation16] sm:$0xff] %vm180, %v364
      %367 = vst.msk [vmem:[#allocation16 + $0x8] sm:$0xff] %vm180, %v365
    $region41: #{tpu_custom_call.1} parent=1 // pred_fallthru
      _
    // Predicated region
    $region42: #{tpu_custom_call.1} parent=1 // pred_check
      _
    $region43: #{tpu_custom_call.1} parent=1 // pred_check_branch
      %369 = sbr.rel (0) target = $region45
    $region44: #{tpu_custom_call.1} parent=1 // pred_region
      %s371 = ssub.s32 256, 256
      %372 = vsyncadd [#allocation7], %s371
      %s373 = sshll.u32 [#allocation13], 4
      %s374 = int_to_ptr.vmem [resolvable:$true] %s373
      %379 = dma.vmem_to_hbm [thread:$0]  %s374, 256, %s4, [#allocation7], 128, 128, 8
    $region45: #{tpu_custom_call.1} parent=1 // pred_fallthru
      _
    // Predicated region
    $region46: #{tpu_custom_call.1} parent=1 // pred_check
      _
    $region47: #{tpu_custom_call.1} parent=1 // pred_check_branch
      %381 = sbr.rel (0) target = $region49
    $region48: #{tpu_custom_call.1} parent=1 // pred_region
      %s383 = ssub.s32 256, 256
      %384 = vsyncadd [#allocation15], %s383
      %s385 = sshll.u32 [#allocation14], 4
      %s386 = int_to_ptr.vmem [resolvable:$true] %s385
      %391 = dma.vmem_to_hbm [thread:$0]  %s386, 256, %s5, [#allocation15], 128, 128, 8
    $region49: #{tpu_custom_call.1} parent=1 // pred_fallthru
      _
    // Predicated region
    $region50: #{tpu_custom_call.1} parent=1 // pred_check
      _
    $region51: #{tpu_custom_call.1} parent=1 // pred_check_branch
      %393 = sbr.rel (0) target = $region53
    $region52: #{tpu_custom_call.1} parent=1 // pred_region
      %s395 = ssub.s32 256, 256
      %396 = vsyncadd [#allocation15], %s395
      %s397 = sshll.u32 [#allocation16], 4
      %s398 = int_to_ptr.vmem [resolvable:$true] %s397
      %403 = dma.vmem_to_hbm [thread:$0]  %s398, 256, %s6, [#allocation15], 128, 128, 8
    $region53: #{tpu_custom_call.1} parent=1 // pred_fallthru
      _
    // Predicated region
    $region54: #{tpu_custom_call.1} parent=1 // pred_check
      _
    $region55: #{tpu_custom_call.1} parent=1 // pred_check_branch
      %405 = sbr.rel (0) target = $region57
    $region56: #{tpu_custom_call.1} parent=1 // pred_region
      %406 = dma.done [#allocation7], 256
    $region57: #{tpu_custom_call.1} parent=1 // pred_fallthru
      _
    // Predicated region
    $region58: #{tpu_custom_call.1} parent=1 // pred_check
      _
    $region59: #{tpu_custom_call.1} parent=1 // pred_check_branch
      %408 = sbr.rel (0) target = $region61
    $region60: #{tpu_custom_call.1} parent=1 // pred_region
      %409 = dma.done [#allocation15], 256
    $region61: #{tpu_custom_call.1} parent=1 // pred_fallthru
      _
    // Predicated region
    $region62: #{tpu_custom_call.1} parent=1 // pred_check
      _
    $region63: #{tpu_custom_call.1} parent=1 // pred_check_branch
      %411 = sbr.rel (0) target = $region65
    $region64: #{tpu_custom_call.1} parent=1 // pred_region
      %412 = dma.done [#allocation15], 256
    $region65: #{tpu_custom_call.1} parent=1 // pred_fallthru
      _
    %413 = vsyncpa [#allocation6], 1
    %414 = vsyncpa [#allocation9], 1
    %415 = vsyncpa [#allocation12], 1
    %416 = vsyncpa [#allocation7], 1
    %417 = vsyncpa [#allocation15], 1

</llo_original>
